<compile_context>
chip_gen: v5e
topology: v5e:2x2
jax: 0.10.0
libtpu: 0.0.40
codegen_flags: <defaults>
</compile_context>

<pallas_src>
import re
from types import SimpleNamespace

import numpy as np
import jax
import jax.numpy as jnp
from jax.experimental import pallas as pl
from jax.experimental.pallas import tpu as pltpu

LANE = 128
SUBLANE = 8
NUM_SPLITS = 2            # leading "parallel" grid axis: 2 TensorCores on v7x


def _cdiv(a, b):
    return -(-a // b)


def _round_up(a, b):
    return _cdiv(a, b) * b


def _has_big_vmem():
    """True on 128-MiB-VMEM chips (v5e/v6e); False on v7x / unknown."""
    try:
        return pltpu.get_tpu_info().vmem_capacity_bytes >= (100 << 20)
    except Exception:
        return False


def _choose_tiling(rows, n_heads, bytes_per_row):
    """Pick (tile_rows, chunk_rows, n_tiles_per_split, padded_rows).

    tile_rows:   DMA tile (double-buffered by BlockSpec), VMEM-budget aware.
    chunk_rows:  inner-loop chunk bounding the live vreg set to roughly
                 (n_heads + 4) * chunk_rows/8 <= ~48 vregs.
    padded_rows: rows padded so the grid tiles exactly (no divisor walk-down,
                 no tiny-tile fallback).
    """
    rows_per_split = _round_up(_cdiv(rows, NUM_SPLITS), SUBLANE)

    chunk_rows = max(SUBLANE,
                     min(256, ((384 // (n_heads + 4)) // SUBLANE) * SUBLANE))
    chunk_rows = min(chunk_rows, rows_per_split)

    # Generation-aware VMEM budget for the double-buffered input tiles.
    if _has_big_vmem():                       # v5e / v6e: 128 MiB physical
        vmem_budget, cap_rows = 64 << 20, 2048
    else:                                     # v7x-safe defaults: 64 MiB physical
        vmem_budget, cap_rows = 24 << 20, 1024

    cap = min(cap_rows, max(chunk_rows, vmem_budget // (2 * bytes_per_row)))
    tile_rows = min(cap, rows_per_split)
    tile_rows = max(chunk_rows, (tile_rows // chunk_rows) * chunk_rows)

    n_tiles_per_split = _cdiv(rows_per_split, tile_rows)
    padded_rows = NUM_SPLITS * n_tiles_per_split * tile_rows
    return tile_rows, chunk_rows, n_tiles_per_split, padded_rows


def _make_coseg_kernel(n_heads, n_pairs, chunk_rows, n_chunks):
    """Kernel body for a fixed head count / chunking."""
    chunk_sub = chunk_rows // SUBLANE

    def kernel(*refs):
        # refs layout:
        #   [0, H)    prob-map tiles,   VMEM (tile_rows, 128), native dtype
        #   [H, 2H)   pseudo-mask tiles, VMEM (tile_rows, 128)
        #   2H        shield-mask tile,  VMEM (tile_rows, 128)
        #   2H+1      accumulator OUTPUT, VMEM (1, 3H+P, 8, 128) f32,
        #             resident across the reduction axis (same block index).
        prob_refs = refs[:n_heads]
        mask_refs = refs[n_heads:2 * n_heads]
        shield_ref = refs[2 * n_heads]
        acc_ref = refs[2 * n_heads + 1]

        @pl.when(pl.program_id(1) == 0)
        def _():
            acc_ref[...] = jnp.zeros_like(acc_ref)

        def bsum(x):
            # (chunk_rows, 128) f32 -> (8, 128): pure elementwise VPU adds.
            return jnp.sum(x.reshape(chunk_sub, SUBLANE, LANE), axis=0)

        # Inner loop over small row chunks bounds the live vreg set: only the
        # H masked chunk slabs + a couple of transients are live at once.
        @pl.loop(0, n_chunks)
        def _(c):
            row0 = pl.multiple_of(c * chunk_rows, chunk_rows)
            rows = pl.ds(row0, chunk_rows)

            # Uncertain region (exact small-integer values; works for float or
            # int shield dtypes -- same semantics as torch's `shield_mask == 2`).
            in_region = shield_ref[rows, :] == 2

            masked = []
            for i in range(n_heads):
                p = prob_refs[i][rows, :].astype(jnp.float32)
                t = mask_refs[i][rows, :].astype(jnp.float32)
                acc_ref[0, 3 * i + 0] += bsum(p * t)
                acc_ref[0, 3 * i + 1] += bsum(p)
                acc_ref[0, 3 * i + 2] += bsum(t)
                masked.append(jnp.where(in_region, p, 0.0))

            # Consistency (masked MSE) partial sums per head pair.
            # TODO(synk): for n_heads >= ~6 offload the cross terms to the MXU
            #             (sum((mi-mj)^2) = Sii + Sjj - 2*Sij via a per-chunk
            #             Gram matrix) instead of this O(H^2) VPU loop.
            k = 3 * n_heads
            for i in range(n_heads):
                for j in range(i + 1, n_heads):
                    d = masked[i] - masked[j]
                    acc_ref[0, k] += bsum(d * d)
                    k += 1

    return kernel


def _coseg_sums(prob_list, mask_list, shield, tile_rows, chunk_rows,
                n_tiles_per_split):
    """prob_list/mask_list: lists of (padded_rows, 128) arrays (native dtype);
    shield: (padded_rows, 128).
    Returns ((n_heads, 3) dice partial sums, (n_pair_slots,) sq-diff sums)."""
    n_heads = len(prob_list)
    padded_rows, lanes = shield.shape
    assert lanes == LANE
    n_pairs = n_heads * (n_heads - 1) // 2
    n_pair_slots = max(n_pairs, 1)
    n_slots = 3 * n_heads + n_pair_slots
    n_chunks = tile_rows // chunk_rows

    grid = (NUM_SPLITS, n_tiles_per_split)
    row_spec = pl.BlockSpec((tile_rows, LANE),
                            lambda c, r: (c * n_tiles_per_split + r, 0))
    in_specs = [row_spec] * (2 * n_heads + 1)

    # Explicit VMEM sizing: double-buffered input tiles + accumulator block +
    # headroom; generation-aware cap (48 MiB v7x-safe, 100 MiB on v5e/v6e).
    itemsizes = [jnp.dtype(a.dtype).itemsize
                 for a in (list(prob_list) + list(mask_list) + [shield])]
    tile_bytes = sum(itemsizes) * tile_rows * LANE
    acc_bytes = 2 * n_slots * SUBLANE * LANE * 4
    vmem_cap = (100 << 20) if _has_big_vmem() else (48 << 20)
    vmem_limit = int(min(max(2 * tile_bytes + acc_bytes + (8 << 20), 32 << 20),
                         vmem_cap))

    kernel = _make_coseg_kernel(n_heads, n_pairs, chunk_rows, n_chunks)

    acc = pl.pallas_call(
        kernel,
        out_shape=jax.ShapeDtypeStruct(
            (NUM_SPLITS, n_slots, SUBLANE, LANE), jnp.float32),
        grid_spec=pltpu.PrefetchScalarGridSpec(
            num_scalar_prefetch=0,
            grid=grid,
            in_specs=in_specs,
            # Output block indexed only by the core axis -> per-core VMEM
            # accumulator, written back once per core; no cross-core race.
            out_specs=pl.BlockSpec((1, n_slots, SUBLANE, LANE),
                                   lambda c, r: (c, 0, 0, 0)),
        ),
        compiler_params=pltpu.CompilerParams(
            dimension_semantics=("parallel", "arbitrary"),
            vmem_limit_bytes=vmem_limit,
        ),
    )(*prob_list, *mask_list, shield)

    # Tiny final reduction (cross-lane + cross-core) done in XLA.
    sums = jnp.sum(acc, axis=(0, 2, 3))                       # (n_slots,)
    supv_sums = sums[:3 * n_heads].reshape(n_heads, 3)
    pair_sums = sums[3 * n_heads:3 * n_heads + n_pair_slots]
    return supv_sums, pair_sums


def _dice_from_sums(inter, psum, tsum, eps=1e-5):
    return 1.0 - (2.0 * inter + eps) / (psum + tsum + eps)


def head_coseg_loss(head_out_dict, target, cfg):
    """JAX re-implementation of HeadCoSegLoss.forward."""
    out_names = list(head_out_dict.keys())
    head_num = len(out_names)
    head_name_list = [re.sub('_prob_map', '', k) for k in out_names]  # noqa: F841

    cons_loss_name_list = []
    for i in range(head_num):
        for j in range(i + 1, head_num):
            cons_loss_name_list.append(f'_{i}vs{j}_cons_loss')

    shield = target['shield_mask']                      # (N, C, Hs, Ws)
    # TODO(synk): head/mask pairing relies on dict insertion order, exactly as
    #             the PyTorch reference (list(target['psuedo_mask_dict'].values())[i]).
    mask_values = list(target['psuedo_mask_dict'].values())

    numel = int(np.prod(shield.shape))
    rows = _cdiv(numel, LANE)

    # Kernel streams native dtypes and upcasts per-chunk, so narrower inputs
    # (int8 masks/shield, bf16 prob maps) are supported without a wrapper pass.
    itemsizes = ([jnp.dtype(head_out_dict[k].dtype).itemsize for k in out_names]
                 + [jnp.dtype(m.dtype).itemsize for m in mask_values]
                 + [jnp.dtype(shield.dtype).itemsize])
    bytes_per_row = sum(itemsizes) * LANE

    tile_rows, chunk_rows, n_tiles_per_split, padded_rows = _choose_tiling(
        rows, head_num, bytes_per_row)
    padded_numel = padded_rows * LANE

    def to_slab(x):
        # Reshape is free on contiguous arrays; zero-padding (only when the
        # size is ragged) contributes nothing to any accumulated sum.
        flat = x.reshape(-1)
        if padded_numel != numel:
            flat = jnp.pad(flat, (0, padded_numel - numel))
        return flat.reshape(padded_rows, LANE)

    prob_list = [to_slab(head_out_dict[k]) for k in out_names]
    mask_list = [to_slab(m) for m in mask_values]
    shield2 = to_slab(shield)

    supv_sums, pair_sums = _coseg_sums(prob_list, mask_list, shield2,
                                       tile_rows, chunk_rows, n_tiles_per_split)

    # per-head supervised (Dice) losses
    dice = _dice_from_sums(supv_sums[:, 0], supv_sums[:, 1], supv_sums[:, 2])
    # per-pair consistency (MSE) losses: torch MSELoss on the full-size masked
    # tensors -> mean over the ORIGINAL (unpadded) element count.
    mse = pair_sums / jnp.float32(numel)

    supv_loss_dict = {}
    cons_loss_dict = {n: jnp.float32(0.0) for n in cons_loss_name_list}

    supv_loss = jnp.float32(0.0)
    cons_loss = jnp.float32(0.0)
    cons_cur = 0
    for i in range(head_num):
        supv_loss_dict[f'_{i}_supv_loss'] = dice[i]
        supv_loss = supv_loss + dice[i]
        for j in range(i + 1, head_num):
            cons_loss_dict[cons_loss_name_list[cons_cur]] = mse[cons_cur]
            cons_loss = cons_loss + mse[cons_cur]
            cons_cur += 1

    supv_loss = supv_loss / head_num
    n_pairs = (head_num - 1) * head_num // 2
    if n_pairs != 0:
        cons_loss = cons_loss / n_pairs

    cons_weight = jnp.where(supv_loss > cfg.cons_delay,
                            jnp.float32(0.0), jnp.float32(cfg.weight[1]))
    total = cfg.weight[0] * supv_loss + cons_weight * cons_loss

    loss_dict = {'total_loss': total, 'supv_loss': supv_loss, 'cons_loss': cons_loss}
    loss_dict.update(supv_loss_dict)
    loss_dict.update(cons_loss_dict)
    return loss_dict


if __name__ == "__main__":
    # deterministic config (no learned parameters in this loss module)
    cfg = SimpleNamespace(
        model_num=2,
        supv_loss='dice',
        cons_loss='mse',
        cons_delay=10.0,       # supv_loss <= delay -> consistency active
        weight=[1.0, 0.5],
    )

    # small shapes: 2 heads, batch=2, channels=1, spatial=32x32
    key = jax.random.PRNGKey(0)
    k0, k1, k2, k3, k4 = jax.random.split(key, 5)
    shp = (2, 1, 32, 32)

    head_out_dict = {
        'head_0_prob_map': jax.nn.sigmoid(jax.random.normal(k0, shp, jnp.float32)),
        'head_1_prob_map': jax.nn.sigmoid(jax.random.normal(k1, shp, jnp.float32)),
    }
    target = {
        'psuedo_mask_dict': {
            'mask_0': (jax.random.normal(k2, shp) > 0).astype(jnp.float32),
            'mask_1': (jax.random.normal(k3, shp) > 0).astype(jnp.float32),
        },
        # shield mask in {0, 1, 2}; region == 2 is the "uncertain" region
        'shield_mask': jax.random.randint(k4, shp, 0, 3).astype(jnp.float32),
    }

    loss_dict = head_coseg_loss(head_out_dict, target, cfg)
    jax.block_until_ready(loss_dict['total_loss'])
    print("KERNEL_OK")
</pallas_src>

<mosaic_0001>
module attributes {stable_mosaic.version = 11 : i64} {
  func.func @kernel(%arg0: i32, %arg1: i32, %arg2: memref<8x128xf32, #tpu.memory_space<vmem>>, %arg3: memref<8x128xf32, #tpu.memory_space<vmem>>, %arg4: memref<8x128xf32, #tpu.memory_space<vmem>>, %arg5: memref<8x128xf32, #tpu.memory_space<vmem>>, %arg6: memref<8x128xf32, #tpu.memory_space<vmem>>, %arg7: memref<1x7x8x128xf32, #tpu.memory_space<vmem>>) attributes {dimension_semantics = [#tpu.dimension_semantics<parallel>, #tpu.dimension_semantics<arbitrary>], iteration_bounds = array<i64: 2, 1>, scalar_prefetch = 0 : i64, scratch_operands = 0 : i64, tpu.core_type = #tpu.core_type<tc>, window_params = [{transform_indices = @transform_0, window_bounds = array<i64: 8, 128>}, {transform_indices = @transform_1, window_bounds = array<i64: 8, 128>}, {transform_indices = @transform_2, window_bounds = array<i64: 8, 128>}, {transform_indices = @transform_3, window_bounds = array<i64: 8, 128>}, {transform_indices = @transform_4, window_bounds = array<i64: 8, 128>}, {transform_indices = @transform_5, window_bounds = array<i64: 1, 7, 8, 128>}]} {
    %c0_i32 = arith.constant 0 : i32
    %0 = arith.cmpi eq, %arg1, %c0_i32 : i32
    %1 = arith.extui %0 : i1 to i32
    %c0_i32_0 = arith.constant 0 : i32
    %2 = arith.cmpi ne, %1, %c0_i32_0 : i32
    scf.if %2 {
      %cst_67 = arith.constant 0.000000e+00 : f32
      %83 = vector.broadcast %cst_67 : f32 to vector<1x7x8x128xf32>
      %c0_68 = arith.constant 0 : index
      %c0_69 = arith.constant 0 : index
      %c0_70 = arith.constant 0 : index
      %c0_71 = arith.constant 0 : index
      %84 = vector.load %arg7[%c0_68, %c0_69, %c0_70, %c0_71] : memref<1x7x8x128xf32, #tpu.memory_space<vmem>>, vector<1x7x8x128xf32>
      tpu.vector_store %arg7[%c0_68, %c0_69, %c0_70, %c0_71], %83 {strides = array<i32>} : memref<1x7x8x128xf32, #tpu.memory_space<vmem>>, vector<1x7x8x128xf32>,
    } else {
    }
    %c0_i32_1 = arith.constant 0 : i32
    %c1_i32 = arith.constant 1 : i32
    %3 = arith.muli %c0_i32_1, %c1_i32 : i32
    %c0_i32_2 = arith.constant 0 : i32
    %4 = arith.addi %c0_i32_2, %3 : i32
    %c8_i32 = arith.constant 8 : i32
    %5 = arith.muli %4, %c8_i32 : i32
    %6 = tpu.assume_multiple %5, 8 : i32
    %7 = arith.index_cast %6 : i32 to index
    %c0 = arith.constant 0 : index
    %8 = vector.load %arg6[%7, %c0] : memref<8x128xf32, #tpu.memory_space<vmem>>, vector<8x128xf32>
    %cst = arith.constant 2.000000e+00 : f32
    %9 = vector.broadcast %cst : f32 to vector<8x128xf32>
    %10 = arith.cmpf oeq, %8, %9 : vector<8x128xf32>
    %11 = arith.index_cast %6 : i32 to index
    %c0_3 = arith.constant 0 : index
    %12 = vector.load %arg2[%11, %c0_3] : memref<8x128xf32, #tpu.memory_space<vmem>>, vector<8x128xf32>
    %13 = arith.index_cast %6 : i32 to index
    %c0_4 = arith.constant 0 : index
    %14 = vector.load %arg4[%13, %c0_4] : memref<8x128xf32, #tpu.memory_space<vmem>>, vector<8x128xf32>
    %c0_5 = arith.constant 0 : index
    %c0_6 = arith.constant 0 : index
    %c0_7 = arith.constant 0 : index
    %c0_8 = arith.constant 0 : index
    %15 = vector.load %arg7[%c0_5, %c0_6, %c0_7, %c0_8] : memref<1x7x8x128xf32, #tpu.memory_space<vmem>>, vector<1x1x8x128xf32>
    %16 = vector.shape_cast %15 : vector<1x1x8x128xf32> to vector<8x128xf32>
    %17 = arith.mulf %12, %14 : vector<8x128xf32>
    %18 = vector.shape_cast %17 : vector<8x128xf32> to vector<1x8x128xf32>
    %cst_9 = arith.constant dense<0.000000e+00> : vector<8x128xf32>
    %19 = vector.multi_reduction <add>, %18, %cst_9 [0] : vector<1x8x128xf32> to vector<8x128xf32>
    %20 = arith.addf %16, %19 : vector<8x128xf32>
    %c0_10 = arith.constant 0 : index
    %c0_11 = arith.constant 0 : index
    %c0_12 = arith.constant 0 : index
    %c0_13 = arith.constant 0 : index
    %21 = vector.load %arg7[%c0_10, %c0_11, %c0_12, %c0_13] : memref<1x7x8x128xf32, #tpu.memory_space<vmem>>, vector<1x1x8x128xf32>
    %22 = vector.shape_cast %21 : vector<1x1x8x128xf32> to vector<8x128xf32>
    %23 = vector.shape_cast %20 : vector<8x128xf32> to vector<1x1x8x128xf32>
    tpu.vector_store %arg7[%c0_10, %c0_11, %c0_12, %c0_13], %23 {strides = array<i32>} : memref<1x7x8x128xf32, #tpu.memory_space<vmem>>, vector<1x1x8x128xf32>,
    %c0_14 = arith.constant 0 : index
    %c1 = arith.constant 1 : index
    %c0_15 = arith.constant 0 : index
    %c0_16 = arith.constant 0 : index
    %24 = vector.load %arg7[%c0_14, %c1, %c0_15, %c0_16] : memref<1x7x8x128xf32, #tpu.memory_space<vmem>>, vector<1x1x8x128xf32>
    %25 = vector.shape_cast %24 : vector<1x1x8x128xf32> to vector<8x128xf32>
    %26 = vector.shape_cast %12 : vector<8x128xf32> to vector<1x8x128xf32>
    %cst_17 = arith.constant dense<0.000000e+00> : vector<8x128xf32>
    %27 = vector.multi_reduction <add>, %26, %cst_17 [0] : vector<1x8x128xf32> to vector<8x128xf32>
    %28 = arith.addf %25, %27 : vector<8x128xf32>
    %c0_18 = arith.constant 0 : index
    %c1_19 = arith.constant 1 : index
    %c0_20 = arith.constant 0 : index
    %c0_21 = arith.constant 0 : index
    %29 = vector.load %arg7[%c0_18, %c1_19, %c0_20, %c0_21] : memref<1x7x8x128xf32, #tpu.memory_space<vmem>>, vector<1x1x8x128xf32>
    %30 = vector.shape_cast %29 : vector<1x1x8x128xf32> to vector<8x128xf32>
    %31 = vector.shape_cast %28 : vector<8x128xf32> to vector<1x1x8x128xf32>
    tpu.vector_store %arg7[%c0_18, %c1_19, %c0_20, %c0_21], %31 {strides = array<i32>} : memref<1x7x8x128xf32, #tpu.memory_space<vmem>>, vector<1x1x8x128xf32>,
    %c0_22 = arith.constant 0 : index
    %c2 = arith.constant 2 : index
    %c0_23 = arith.constant 0 : index
    %c0_24 = arith.constant 0 : index
    %32 = vector.load %arg7[%c0_22, %c2, %c0_23, %c0_24] : memref<1x7x8x128xf32, #tpu.memory_space<vmem>>, vector<1x1x8x128xf32>
    %33 = vector.shape_cast %32 : vector<1x1x8x128xf32> to vector<8x128xf32>
    %34 = vector.shape_cast %14 : vector<8x128xf32> to vector<1x8x128xf32>
    %cst_25 = arith.constant dense<0.000000e+00> : vector<8x128xf32>
    %35 = vector.multi_reduction <add>, %34, %cst_25 [0] : vector<1x8x128xf32> to vector<8x128xf32>
    %36 = arith.addf %33, %35 : vector<8x128xf32>
    %c0_26 = arith.constant 0 : index
    %c2_27 = arith.constant 2 : index
    %c0_28 = arith.constant 0 : index
    %c0_29 = arith.constant 0 : index
    %37 = vector.load %arg7[%c0_26, %c2_27, %c0_28, %c0_29] : memref<1x7x8x128xf32, #tpu.memory_space<vmem>>, vector<1x1x8x128xf32>
    %38 = vector.shape_cast %37 : vector<1x1x8x128xf32> to vector<8x128xf32>
    %39 = vector.shape_cast %36 : vector<8x128xf32> to vector<1x1x8x128xf32>
    tpu.vector_store %arg7[%c0_26, %c2_27, %c0_28, %c0_29], %39 {strides = array<i32>} : memref<1x7x8x128xf32, #tpu.memory_space<vmem>>, vector<1x1x8x128xf32>,
    %cst_30 = arith.constant 0.000000e+00 : f32
    %40 = vector.broadcast %cst_30 : f32 to vector<8x128xf32>
    %41 = arith.select %10, %12, %40 : vector<8x128xi1>, vector<8x128xf32>
    %42 = arith.index_cast %6 : i32 to index
    %c0_31 = arith.constant 0 : index
    %43 = vector.load %arg3[%42, %c0_31] : memref<8x128xf32, #tpu.memory_space<vmem>>, vector<8x128xf32>
    %44 = arith.index_cast %6 : i32 to index
    %c0_32 = arith.constant 0 : index
    %45 = vector.load %arg5[%44, %c0_32] : memref<8x128xf32, #tpu.memory_space<vmem>>, vector<8x128xf32>
    %c0_33 = arith.constant 0 : index
    %c3 = arith.constant 3 : index
    %c0_34 = arith.constant 0 : index
    %c0_35 = arith.constant 0 : index
    %46 = vector.load %arg7[%c0_33, %c3, %c0_34, %c0_35] : memref<1x7x8x128xf32, #tpu.memory_space<vmem>>, vector<1x1x8x128xf32>
    %47 = vector.shape_cast %46 : vector<1x1x8x128xf32> to vector<8x128xf32>
    %48 = arith.mulf %43, %45 : vector<8x128xf32>
    %49 = vector.shape_cast %48 : vector<8x128xf32> to vector<1x8x128xf32>
    %cst_36 = arith.constant dense<0.000000e+00> : vector<8x128xf32>
    %50 = vector.multi_reduction <add>, %49, %cst_36 [0] : vector<1x8x128xf32> to vector<8x128xf32>
    %51 = arith.addf %47, %50 : vector<8x128xf32>
    %c0_37 = arith.constant 0 : index
    %c3_38 = arith.constant 3 : index
    %c0_39 = arith.constant 0 : index
    %c0_40 = arith.constant 0 : index
    %52 = vector.load %arg7[%c0_37, %c3_38, %c0_39, %c0_40] : memref<1x7x8x128xf32, #tpu.memory_space<vmem>>, vector<1x1x8x128xf32>
    %53 = vector.shape_cast %52 : vector<1x1x8x128xf32> to vector<8x128xf32>
    %54 = vector.shape_cast %51 : vector<8x128xf32> to vector<1x1x8x128xf32>
    tpu.vector_store %arg7[%c0_37, %c3_38, %c0_39, %c0_40], %54 {strides = array<i32>} : memref<1x7x8x128xf32, #tpu.memory_space<vmem>>, vector<1x1x8x128xf32>,
    %c0_41 = arith.constant 0 : index
    %c4 = arith.constant 4 : index
    %c0_42 = arith.constant 0 : index
    %c0_43 = arith.constant 0 : index
    %55 = vector.load %arg7[%c0_41, %c4, %c0_42, %c0_43] : memref<1x7x8x128xf32, #tpu.memory_space<vmem>>, vector<1x1x8x128xf32>
    %56 = vector.shape_cast %55 : vector<1x1x8x128xf32> to vector<8x128xf32>
    %57 = vector.shape_cast %43 : vector<8x128xf32> to vector<1x8x128xf32>
    %cst_44 = arith.constant dense<0.000000e+00> : vector<8x128xf32>
    %58 = vector.multi_reduction <add>, %57, %cst_44 [0] : vector<1x8x128xf32> to vector<8x128xf32>
    %59 = arith.addf %56, %58 : vector<8x128xf32>
    %c0_45 = arith.constant 0 : index
    %c4_46 = arith.constant 4 : index
    %c0_47 = arith.constant 0 : index
    %c0_48 = arith.constant 0 : index
    %60 = vector.load %arg7[%c0_45, %c4_46, %c0_47, %c0_48] : memref<1x7x8x128xf32, #tpu.memory_space<vmem>>, vector<1x1x8x128xf32>
    %61 = vector.shape_cast %60 : vector<1x1x8x128xf32> to vector<8x128xf32>
    %62 = vector.shape_cast %59 : vector<8x128xf32> to vector<1x1x8x128xf32>
    tpu.vector_store %arg7[%c0_45, %c4_46, %c0_47, %c0_48], %62 {strides = array<i32>} : memref<1x7x8x128xf32, #tpu.memory_space<vmem>>, vector<1x1x8x128xf32>,
    %c0_49 = arith.constant 0 : index
    %c5 = arith.constant 5 : index
    %c0_50 = arith.constant 0 : index
    %c0_51 = arith.constant 0 : index
    %63 = vector.load %arg7[%c0_49, %c5, %c0_50, %c0_51] : memref<1x7x8x128xf32, #tpu.memory_space<vmem>>, vector<1x1x8x128xf32>
    %64 = vector.shape_cast %63 : vector<1x1x8x128xf32> to vector<8x128xf32>
    %65 = vector.shape_cast %45 : vector<8x128xf32> to vector<1x8x128xf32>
    %cst_52 = arith.constant dense<0.000000e+00> : vector<8x128xf32>
    %66 = vector.multi_reduction <add>, %65, %cst_52 [0] : vector<1x8x128xf32> to vector<8x128xf32>
    %67 = arith.addf %64, %66 : vector<8x128xf32>
    %c0_53 = arith.constant 0 : index
    %c5_54 = arith.constant 5 : index
    %c0_55 = arith.constant 0 : index
    %c0_56 = arith.constant 0 : index
    %68 = vector.load %arg7[%c0_53, %c5_54, %c0_55, %c0_56] : memref<1x7x8x128xf32, #tpu.memory_space<vmem>>, vector<1x1x8x128xf32>
    %69 = vector.shape_cast %68 : vector<1x1x8x128xf32> to vector<8x128xf32>
    %70 = vector.shape_cast %67 : vector<8x128xf32> to vector<1x1x8x128xf32>
    tpu.vector_store %arg7[%c0_53, %c5_54, %c0_55, %c0_56], %70 {strides = array<i32>} : memref<1x7x8x128xf32, #tpu.memory_space<vmem>>, vector<1x1x8x128xf32>,
    %cst_57 = arith.constant 0.000000e+00 : f32
    %71 = vector.broadcast %cst_57 : f32 to vector<8x128xf32>
    %72 = arith.select %10, %43, %71 : vector<8x128xi1>, vector<8x128xf32>
    %73 = arith.subf %41, %72 : vector<8x128xf32>
    %c0_58 = arith.constant 0 : index
    %c6 = arith.constant 6 : index
    %c0_59 = arith.constant 0 : index
    %c0_60 = arith.constant 0 : index
    %74 = vector.load %arg7[%c0_58, %c6, %c0_59, %c0_60] : memref<1x7x8x128xf32, #tpu.memory_space<vmem>>, vector<1x1x8x128xf32>
    %75 = vector.shape_cast %74 : vector<1x1x8x128xf32> to vector<8x128xf32>
    %76 = arith.mulf %73, %73 : vector<8x128xf32>
    %77 = vector.shape_cast %76 : vector<8x128xf32> to vector<1x8x128xf32>
    %cst_61 = arith.constant dense<0.000000e+00> : vector<8x128xf32>
    %78 = vector.multi_reduction <add>, %77, %cst_61 [0] : vector<1x8x128xf32> to vector<8x128xf32>
    %79 = arith.addf %75, %78 : vector<8x128xf32>
    %c0_62 = arith.constant 0 : index
    %c6_63 = arith.constant 6 : index
    %c0_64 = arith.constant 0 : index
    %c0_65 = arith.constant 0 : index
    %80 = vector.load %arg7[%c0_62, %c6_63, %c0_64, %c0_65] : memref<1x7x8x128xf32, #tpu.memory_space<vmem>>, vector<1x1x8x128xf32>
    %81 = vector.shape_cast %80 : vector<1x1x8x128xf32> to vector<8x128xf32>
    %82 = vector.shape_cast %79 : vector<8x128xf32> to vector<1x1x8x128xf32>
    tpu.vector_store %arg7[%c0_62, %c6_63, %c0_64, %c0_65], %82 {strides = array<i32>} : memref<1x7x8x128xf32, #tpu.memory_space<vmem>>, vector<1x1x8x128xf32>,
    %c1_i32_66 = arith.constant 1 : i32
    return
  }
  func.func @transform_0(%arg0: i32, %arg1: i32) -> (i32, i32) {
    %c1_i32 = arith.constant 1 : i32
    %0 = arith.muli %arg0, %c1_i32 : i32
    %1 = arith.addi %0, %arg1 : i32
    %c0_i32 = arith.constant 0 : i32
    %c0_i32_0 = arith.constant 0 : i32
    return %1, %c0_i32 : i32, i32
  }
  func.func @transform_1(%arg0: i32, %arg1: i32) -> (i32, i32) {
    %c1_i32 = arith.constant 1 : i32
    %0 = arith.muli %arg0, %c1_i32 : i32
    %1 = arith.addi %0, %arg1 : i32
    %c0_i32 = arith.constant 0 : i32
    %c0_i32_0 = arith.constant 0 : i32
    return %1, %c0_i32 : i32, i32
  }
  func.func @transform_2(%arg0: i32, %arg1: i32) -> (i32, i32) {
    %c1_i32 = arith.constant 1 : i32
    %0 = arith.muli %arg0, %c1_i32 : i32
    %1 = arith.addi %0, %arg1 : i32
    %c0_i32 = arith.constant 0 : i32
    %c0_i32_0 = arith.constant 0 : i32
    return %1, %c0_i32 : i32, i32
  }
  func.func @transform_3(%arg0: i32, %arg1: i32) -> (i32, i32) {
    %c1_i32 = arith.constant 1 : i32
    %0 = arith.muli %arg0, %c1_i32 : i32
    %1 = arith.addi %0, %arg1 : i32
    %c0_i32 = arith.constant 0 : i32
    %c0_i32_0 = arith.constant 0 : i32
    return %1, %c0_i32 : i32, i32
  }
  func.func @transform_4(%arg0: i32, %arg1: i32) -> (i32, i32) {
    %c1_i32 = arith.constant 1 : i32
    %0 = arith.muli %arg0, %c1_i32 : i32
    %1 = arith.addi %0, %arg1 : i32
    %c0_i32 = arith.constant 0 : i32
    %c0_i32_0 = arith.constant 0 : i32
    return %1, %c0_i32 : i32, i32
  }
  func.func @transform_5(%arg0: i32, %arg1: i32) -> (i32, i32, i32, i32) {
    %c0_i32 = arith.constant 0 : i32
    %c0_i32_0 = arith.constant 0 : i32
    %c0_i32_1 = arith.constant 0 : i32
    %c0_i32_2 = arith.constant 0 : i32
    return %arg0, %c0_i32, %c0_i32_0, %c0_i32_1 : i32, i32, i32, i32
  }
}

</mosaic_0001>

<llo_original>
// kernel: tpu_custom_call.1
$region0: #{tpu_custom_call.1}
  #allocation0 [shape = 'u32[]', space=smem, size = 0x4, offset = 0x4, fixed_abs, tag = 'smem constant byte address 0x4 - core index']
  #allocation1 [shape = 'u32[72,128]{1,0:T(1,128)}', space=vmem, size = 0x9000, scoped, tag = 'internal scratch']
  %s0 = inlined_call_operand.hbm [shape: f32[16,128], index: 0, kind: input, shape index: {}]
  %s1 = inlined_call_operand.hbm [shape: f32[16,128], index: 1, kind: input, shape index: {}]
  %s2 = inlined_call_operand.hbm [shape: f32[16,128], index: 2, kind: input, shape index: {}]
  %s3 = inlined_call_operand.hbm [shape: f32[16,128], index: 3, kind: input, shape index: {}]
  %s4 = inlined_call_operand.hbm [shape: f32[16,128], index: 4, kind: input, shape index: {}]
  %s5 = inlined_call_operand.hbm [shape: f32[2,7,8,128], index: 5, kind: output, shape index: {}]
  %s6 = sld [smem:[#allocation0]]
  $region77: #{tpu_custom_call.1} parent=0
    _
  %s8 = ssub.s32 1, %s6
  %s9 = scalar_select 0, %s8, %s6
  $region1: #{tpu_custom_call.1} parent=0
    #allocation2 [shape = 'u8[8192]{0}', space=vmem, size = 0x2000, scoped, tag = 'input window, operand 0']
    #allocation3 [shape = 's32[2]{0}', space=sflag, size = 0x8, scoped, tag = 'scoped memory for tpu_custom_call.1']
    #allocation4 [shape = 's32[2]{0}', space=sflag, size = 0x8, scoped, tag = 'scoped memory for tpu_custom_call.1']
    #allocation5 [shape = 'u8[8192]{0}', space=vmem, size = 0x2000, scoped, tag = 'input window, operand 1']
    #allocation6 [shape = 's32[2]{0}', space=sflag, size = 0x8, scoped, tag = 'scoped memory for tpu_custom_call.1']
    #allocation7 [shape = 'u8[8192]{0}', space=vmem, size = 0x2000, scoped, tag = 'input window, operand 2']
    #allocation8 [shape = 'u8[8192]{0}', space=vmem, size = 0x2000, scoped, tag = 'input window, operand 3']
    #allocation9 [shape = 's32[2]{0}', space=sflag, size = 0x8, scoped, tag = 'scoped memory for tpu_custom_call.1']
    #allocation10 [shape = 'u8[8192]{0}', space=vmem, size = 0x2000, scoped, tag = 'input window, operand 4']
    #allocation11 [shape = 'u8[57344]{0}', space=vmem, size = 0xe000, scoped, tag = 'output window, operand 0']
    %10 = vsyncpa [#allocation3], 0
    %s11 = scalar_lea.sflag [#allocation3], 1
    %12 = vsyncpa %s11, 0
    %13 = vsyncpa [#allocation6], 0
    %s14 = scalar_lea.sflag [#allocation6], 1
    %15 = vsyncpa %s14, 0
    %16 = vsyncpa [#allocation9], 0
    %s17 = scalar_lea.sflag [#allocation9], 1
    %18 = vsyncpa %s17, 0
    %19 = vsyncpa [#allocation4], 0
    %s20 = scalar_lea.sflag [#allocation4], 1
    %21 = vsyncpa %s20, 0
    loop: start=0, step=1, limit=4
    $region2: #{tpu_custom_call.1} parent=1 // loop_pre_header
      _
    $region3: #{tpu_custom_call.1} parent=1 // loop_header
      %s23 = sphi 0, %s27
      %p24 = scmp.ge.s32.totalorder %s23, 4
      %s30 = sphi 0, %s42
      %s31 = sphi 0, %s38
      %s32 = sphi 0, %s30
      %s33 = sphi 0, %s31
      %s34 = sphi 0, %s32
      %s35 = sphi 0, %s33
      %s47 = sphi 0, %s49
      %s50 = sphi 0, %s47
      %s51 = sphi 0, %s50
      %s67 = sphi 0, %s51
      %s75 = sphi 0, %s77
      %s78 = sphi 0, %s75
      %s79 = sphi 0, %s78
      %s95 = sphi 0, %s79
      %s103 = sphi 0, %s105
      %s106 = sphi 0, %s103
      %s107 = sphi 0, %s106
      %s123 = sphi 0, %s107
      %s131 = sphi 0, %s133
      %s134 = sphi 0, %s131
      %s135 = sphi 0, %s134
      %s151 = sphi 0, %s135
      %s159 = sphi 0, %s161
      %s162 = sphi 0, %s159
      %s163 = sphi 0, %s162
      %s179 = sphi 0, %s163
      %s185 = sphi 0, %s187
      %s188 = sphi 0, %s185
      %s189 = sphi 0, %s188
      %s205 = sphi 0, %s189
    $region4: #{tpu_custom_call.1} parent=1 // loop_header_branch
      %26 = sbr.rel (%p24) target = $region8
    $region5: #{tpu_custom_call.1} parent=1 // loop_body
      %s28 = ssub.s32 %s23, 1
      %s29 = ssub.s32 %s23, 2
      %s36 = sadd.s32 1, %s31
      %p37 = scmp.ge.s32.totalorder %s36, 1
      %s38 = scalar_select %p37, 0, %s36
      %s39 = sadd.s32 1, %s30
      %s40 = scalar_select %p37, %s39, %s30
      %p41 = scmp.ge.s32.totalorder %s40, 2
      %s42 = scalar_select %p41, 0, %s40
      %s43 = sadd.s32 %s30, %s31
      %s44 = sadd.s32 %s42, %s38
      %s45 = ssub.s32 %s43, %s44
      %p46 = scmp.eq.s32.totalorder %s45, 0
      %s48 = sadd.s32 %s47, 1
      %s49 = scalar_select %p46, %s47, %s48
      %p52 = pneg %p46
      %p53 = scmp.eq.s32.totalorder %s23, 1
      %p54 = por %p52, %p53
      %p55 = scmp.ne.s32.totalorder %s47, %s50
      %p56 = scmp.eq.s32.totalorder %s23, 0
      %p57 = por %p55, %p56
      %p58 = scmp.ne.s32.totalorder %s47, %s50
      %p59 = scmp.eq.s32.totalorder %s28, 1
      %p60 = por %p58, %p59
      %p61 = scmp.ne.s32.totalorder %s50, %s51
      %p62 = scmp.eq.s32.totalorder %s28, 0
      %p63 = por %p61, %p62
      %p64 = scmp.ne.s32.totalorder %s50, %s51
      %p65 = scmp.eq.s32.totalorder %s29, 1
      %p66 = por %p64, %p65
      %p68 = scmp.ne.s32.totalorder %s51, %s67
      %p69 = scmp.eq.s32.totalorder %s29, 0
      %p70 = por %p68, %p69
      %s71 = sadd.s32 %s30, %s31
      %s72 = sadd.s32 %s42, %s38
      %s73 = ssub.s32 %s71, %s72
      %p74 = scmp.eq.s32.totalorder %s73, 0
      %s76 = sadd.s32 %s75, 1
      %s77 = scalar_select %p74, %s75, %s76
      %p80 = pneg %p74
      %p81 = scmp.eq.s32.totalorder %s23, 1
      %p82 = por %p80, %p81
      %p83 = scmp.ne.s32.totalorder %s75, %s78
      %p84 = scmp.eq.s32.totalorder %s23, 0
      %p85 = por %p83, %p84
      %p86 = scmp.ne.s32.totalorder %s75, %s78
      %p87 = scmp.eq.s32.totalorder %s28, 1
      %p88 = por %p86, %p87
      %p89 = scmp.ne.s32.totalorder %s78, %s79
      %p90 = scmp.eq.s32.totalorder %s28, 0
      %p91 = por %p89, %p90
      %p92 = scmp.ne.s32.totalorder %s78, %s79
      %p93 = scmp.eq.s32.totalorder %s29, 1
      %p94 = por %p92, %p93
      %p96 = scmp.ne.s32.totalorder %s79, %s95
      %p97 = scmp.eq.s32.totalorder %s29, 0
      %p98 = por %p96, %p97
      %s99 = sadd.s32 %s30, %s31
      %s100 = sadd.s32 %s42, %s38
      %s101 = ssub.s32 %s99, %s100
      %p102 = scmp.eq.s32.totalorder %s101, 0
      %s104 = sadd.s32 %s103, 1
      %s105 = scalar_select %p102, %s103, %s104
      %p108 = pneg %p102
      %p109 = scmp.eq.s32.totalorder %s23, 1
      %p110 = por %p108, %p109
      %p111 = scmp.ne.s32.totalorder %s103, %s106
      %p112 = scmp.eq.s32.totalorder %s23, 0
      %p113 = por %p111, %p112
      %p114 = scmp.ne.s32.totalorder %s103, %s106
      %p115 = scmp.eq.s32.totalorder %s28, 1
      %p116 = por %p114, %p115
      %p117 = scmp.ne.s32.totalorder %s106, %s107
      %p118 = scmp.eq.s32.totalorder %s28, 0
      %p119 = por %p117, %p118
      %p120 = scmp.ne.s32.totalorder %s106, %s107
      %p121 = scmp.eq.s32.totalorder %s29, 1
      %p122 = por %p120, %p121
      %p124 = scmp.ne.s32.totalorder %s107, %s123
      %p125 = scmp.eq.s32.totalorder %s29, 0
      %p126 = por %p124, %p125
      %s127 = sadd.s32 %s30, %s31
      %s128 = sadd.s32 %s42, %s38
      %s129 = ssub.s32 %s127, %s128
      %p130 = scmp.eq.s32.totalorder %s129, 0
      %s132 = sadd.s32 %s131, 1
      %s133 = scalar_select %p130, %s131, %s132
      %p136 = pneg %p130
      %p137 = scmp.eq.s32.totalorder %s23, 1
      %p138 = por %p136, %p137
      %p139 = scmp.ne.s32.totalorder %s131, %s134
      %p140 = scmp.eq.s32.totalorder %s23, 0
      %p141 = por %p139, %p140
      %p142 = scmp.ne.s32.totalorder %s131, %s134
      %p143 = scmp.eq.s32.totalorder %s28, 1
      %p144 = por %p142, %p143
      %p145 = scmp.ne.s32.totalorder %s134, %s135
      %p146 = scmp.eq.s32.totalorder %s28, 0
      %p147 = por %p145, %p146
      %p148 = scmp.ne.s32.totalorder %s134, %s135
      %p149 = scmp.eq.s32.totalorder %s29, 1
      %p150 = por %p148, %p149
      %p152 = scmp.ne.s32.totalorder %s135, %s151
      %p153 = scmp.eq.s32.totalorder %s29, 0
      %p154 = por %p152, %p153
      %s155 = sadd.s32 %s30, %s31
      %s156 = sadd.s32 %s42, %s38
      %s157 = ssub.s32 %s155, %s156
      %p158 = scmp.eq.s32.totalorder %s157, 0
      %s160 = sadd.s32 %s159, 1
      %s161 = scalar_select %p158, %s159, %s160
      %p164 = pneg %p158
      %p165 = scmp.eq.s32.totalorder %s23, 1
      %p166 = por %p164, %p165
      %p167 = scmp.ne.s32.totalorder %s159, %s162
      %p168 = scmp.eq.s32.totalorder %s23, 0
      %p169 = por %p167, %p168
      %p170 = scmp.ne.s32.totalorder %s159, %s162
      %p171 = scmp.eq.s32.totalorder %s28, 1
      %p172 = por %p170, %p171
      %p173 = scmp.ne.s32.totalorder %s162, %s163
      %p174 = scmp.eq.s32.totalorder %s28, 0
      %p175 = por %p173, %p174
      %p176 = scmp.ne.s32.totalorder %s162, %s163
      %p177 = scmp.eq.s32.totalorder %s29, 1
      %p178 = por %p176, %p177
      %p180 = scmp.ne.s32.totalorder %s163, %s179
      %p181 = scmp.eq.s32.totalorder %s29, 0
      %p182 = por %p180, %p181
      %s183 = ssub.s32 %s30, %s42
      %p184 = scmp.eq.s32.totalorder %s183, 0
      %s186 = sadd.s32 %s185, 1
      %s187 = scalar_select %p184, %s185, %s186
      %p190 = pneg %p184
      %p191 = scmp.eq.s32.totalorder %s23, 1
      %p192 = por %p190, %p191
      %p193 = scmp.ne.s32.totalorder %s185, %s188
      %p194 = scmp.eq.s32.totalorder %s23, 0
      %p195 = por %p193, %p194
      %p196 = scmp.ne.s32.totalorder %s185, %s188
      %p197 = scmp.eq.s32.totalorder %s28, 1
      %p198 = por %p196, %p197
      %p199 = scmp.ne.s32.totalorder %s188, %s189
      %p200 = scmp.eq.s32.totalorder %s28, 0
      %p201 = por %p199, %p200
      %p202 = scmp.ne.s32.totalorder %s188, %s189
      %p203 = scmp.eq.s32.totalorder %s29, 1
      %p204 = por %p202, %p203
      %p206 = scmp.ne.s32.totalorder %s189, %s205
      %p207 = scmp.eq.s32.totalorder %s29, 0
      %p208 = por %p206, %p207
      %p209 = scmp.le.s32.totalorder 1, %s23
      %p210 = scmp.lt.s32.totalorder %s23, 3
      %p211 = pnand %p209, %p210
      %p212 = pneg %p211
      // Predicated region
      $region9: #{tpu_custom_call.1} parent=5 // pred_check
        _
      $region10: #{tpu_custom_call.1} parent=5 // pred_check_branch
        %214 = sbr.rel (%p211) target = $region12
      $region11: #{tpu_custom_call.1} parent=5 // pred_region
        %s215 = ssub.s32 %s23, 1
      $region12: #{tpu_custom_call.1} parent=5 // pred_fallthru
        _
      %p216 = scmp.lt.s32.totalorder %s23, 2
      // Predicated region
      $region13: #{tpu_custom_call.1} parent=5 // pred_check
        %p217 = pneg %p216
      $region14: #{tpu_custom_call.1} parent=5 // pred_check_branch
        %219 = sbr.rel (%p217) target = $region16
      $region15: #{tpu_custom_call.1} parent=5 // pred_region
        // Predicated region
        $region17: #{tpu_custom_call.1} parent=15 // pred_check
          %p220 = pneg %p57
        $region18: #{tpu_custom_call.1} parent=15 // pred_check_branch
          %222 = sbr.rel (%p220) target = $region20
        $region19: #{tpu_custom_call.1} parent=15 // pred_region
          %s223 = sand.u32 %s47, 1
          %s224 = scalar_lea.sflag [#allocation3], %s223
          %s225 = sand.u32 %s47, 1
          %s226 = smul.addr %s225, 8
          %s227 = scalar_lea.vmem [#allocation2], %s226
          %s228 = sadd.s32 %s30, %s31
          %230 = vsyncadd %s224, 0
          %s231 = smul.addr %s228, 8
          %s232 = scalar_lea.hbm %s0, %s231
          %s234 = sshll.u32 %s232, 4
          %s235 = int_to_ptr.hbm [resolvable:$true] %s234
          %s236 = sshll.u32 %s227, 4
          %s237 = int_to_ptr.vmem [resolvable:$true] %s236
          %239 = dma.hbm_to_vmem [thread:$0]  %s235, 128, %s237, %s224
        $region20: #{tpu_custom_call.1} parent=15 // pred_fallthru
          _
        // Predicated region
        $region21: #{tpu_custom_call.1} parent=15 // pred_check
          %p240 = pneg %p85
        $region22: #{tpu_custom_call.1} parent=15 // pred_check_branch
          %242 = sbr.rel (%p240) target = $region24
        $region23: #{tpu_custom_call.1} parent=15 // pred_region
          %s243 = sand.u32 %s23, 1
          %s244 = scalar_lea.sflag [#allocation6], %s243
          %s245 = sand.u32 %s75, 1
          %s246 = smul.addr %s245, 8
          %s247 = scalar_lea.vmem [#allocation5], %s246
          %s248 = sadd.s32 %s30, %s31
          %250 = vsyncadd %s244, 0
          %s251 = smul.addr %s248, 8
          %s252 = scalar_lea.hbm %s1, %s251
          %s254 = sshll.u32 %s252, 4
          %s255 = int_to_ptr.hbm [resolvable:$true] %s254
          %s256 = sshll.u32 %s247, 4
          %s257 = int_to_ptr.vmem [resolvable:$true] %s256
          %259 = dma.hbm_to_vmem [thread:$0]  %s255, 128, %s257, %s244
        $region24: #{tpu_custom_call.1} parent=15 // pred_fallthru
          _
        // Predicated region
        $region25: #{tpu_custom_call.1} parent=15 // pred_check
          %p260 = pneg %p113
        $region26: #{tpu_custom_call.1} parent=15 // pred_check_branch
          %262 = sbr.rel (%p260) target = $region28
        $region27: #{tpu_custom_call.1} parent=15 // pred_region
          %s263 = sand.u32 %s23, 1
          %s264 = scalar_lea.sflag [#allocation6], %s263
          %s265 = sand.u32 %s103, 1
          %s266 = smul.addr %s265, 8
          %s267 = scalar_lea.vmem [#allocation7], %s266
          %s268 = sadd.s32 %s30, %s31
          %270 = vsyncadd %s264, 0
          %s271 = smul.addr %s268, 8
          %s272 = scalar_lea.hbm %s2, %s271
          %s274 = sshll.u32 %s272, 4
          %s275 = int_to_ptr.hbm [resolvable:$true] %s274
          %s276 = sshll.u32 %s267, 4
          %s277 = int_to_ptr.vmem [resolvable:$true] %s276
          %279 = dma.hbm_to_vmem [thread:$0]  %s275, 128, %s277, %s264
        $region28: #{tpu_custom_call.1} parent=15 // pred_fallthru
          _
        // Predicated region
        $region29: #{tpu_custom_call.1} parent=15 // pred_check
          %p280 = pneg %p141
        $region30: #{tpu_custom_call.1} parent=15 // pred_check_branch
          %282 = sbr.rel (%p280) target = $region32
        $region31: #{tpu_custom_call.1} parent=15 // pred_region
          %s283 = sand.u32 %s23, 1
          %s284 = scalar_lea.sflag [#allocation9], %s283
          %s285 = sand.u32 %s131, 1
          %s286 = smul.addr %s285, 8
          %s287 = scalar_lea.vmem [#allocation8], %s286
          %s288 = sadd.s32 %s30, %s31
          %290 = vsyncadd %s284, 0
          %s291 = smul.addr %s288, 8
          %s292 = scalar_lea.hbm %s3, %s291
          %s294 = sshll.u32 %s292, 4
          %s295 = int_to_ptr.hbm [resolvable:$true] %s294
          %s296 = sshll.u32 %s287, 4
          %s297 = int_to_ptr.vmem [resolvable:$true] %s296
          %299 = dma.hbm_to_vmem [thread:$0]  %s295, 128, %s297, %s284
        $region32: #{tpu_custom_call.1} parent=15 // pred_fallthru
          _
        // Predicated region
        $region33: #{tpu_custom_call.1} parent=15 // pred_check
          %p300 = pneg %p169
        $region34: #{tpu_custom_call.1} parent=15 // pred_check_branch
          %302 = sbr.rel (%p300) target = $region36
        $region35: #{tpu_custom_call.1} parent=15 // pred_region
          %s303 = sand.u32 %s23, 1
          %s304 = scalar_lea.sflag [#allocation9], %s303
          %s305 = sand.u32 %s159, 1
          %s306 = smul.addr %s305, 8
          %s307 = scalar_lea.vmem [#allocation10], %s306
          %s308 = sadd.s32 %s30, %s31
          %310 = vsyncadd %s304, 0
          %s311 = smul.addr %s308, 8
          %s312 = scalar_lea.hbm %s4, %s311
          %s314 = sshll.u32 %s312, 4
          %s315 = int_to_ptr.hbm [resolvable:$true] %s314
          %s316 = sshll.u32 %s307, 4
          %s317 = int_to_ptr.vmem [resolvable:$true] %s316
          %319 = dma.hbm_to_vmem [thread:$0]  %s315, 128, %s317, %s304
        $region36: #{tpu_custom_call.1} parent=15 // pred_fallthru
          _
      $region16: #{tpu_custom_call.1} parent=5 // pred_fallthru
        _
      %p320 = scmp.le.s32.totalorder 1, %s23
      %p321 = scmp.lt.s32.totalorder %s23, 3
      %p322 = pnand %p320, %p321
      %p323 = pneg %p322
      // Predicated region
      $region37: #{tpu_custom_call.1} parent=5 // pred_check
        _
      $region38: #{tpu_custom_call.1} parent=5 // pred_check_branch
        %325 = sbr.rel (%p322) target = $region40
      $region39: #{tpu_custom_call.1} parent=5 // pred_region
        %s326 = ssub.s32 %s23, 1
        %s327 = sand.u32 %s50, 1
        %s328 = scalar_lea.sflag [#allocation3], %s327
        %s329 = sand.u32 %s50, 1
        %s330 = smul.addr %s329, 8
        %s331 = scalar_lea.vmem [#allocation2], %s330
        // Predicated region
        $region41: #{tpu_custom_call.1} parent=39 // pred_check
          %p332 = pneg %p63
        $region42: #{tpu_custom_call.1} parent=39 // pred_check_branch
          %334 = sbr.rel (%p332) target = $region44
        $region43: #{tpu_custom_call.1} parent=39 // pred_region
          %336 = dma.done %s328, 128
        $region44: #{tpu_custom_call.1} parent=39 // pred_fallthru
          _
        %s337 = sand.u32 %s28, 1
        %s338 = scalar_lea.sflag [#allocation6], %s337
        %s339 = sand.u32 %s78, 1
        %s340 = smul.addr %s339, 8
        %s341 = scalar_lea.vmem [#allocation5], %s340
        // Predicated region
        $region45: #{tpu_custom_call.1} parent=39 // pred_check
          %p342 = pneg %p91
        $region46: #{tpu_custom_call.1} parent=39 // pred_check_branch
          %344 = sbr.rel (%p342) target = $region48
        $region47: #{tpu_custom_call.1} parent=39 // pred_region
          %346 = dma.done %s338, 128
        $region48: #{tpu_custom_call.1} parent=39 // pred_fallthru
          _
        %s347 = sand.u32 %s28, 1
        %s348 = scalar_lea.sflag [#allocation6], %s347
        %s349 = sand.u32 %s106, 1
        %s350 = smul.addr %s349, 8
        %s351 = scalar_lea.vmem [#allocation7], %s350
        // Predicated region
        $region49: #{tpu_custom_call.1} parent=39 // pred_check
          %p352 = pneg %p119
        $region50: #{tpu_custom_call.1} parent=39 // pred_check_branch
          %354 = sbr.rel (%p352) target = $region52
        $region51: #{tpu_custom_call.1} parent=39 // pred_region
          %356 = dma.done %s348, 128
        $region52: #{tpu_custom_call.1} parent=39 // pred_fallthru
          _
        %s357 = sand.u32 %s28, 1
        %s358 = scalar_lea.sflag [#allocation9], %s357
        %s359 = sand.u32 %s134, 1
        %s360 = smul.addr %s359, 8
        %s361 = scalar_lea.vmem [#allocation8], %s360
        // Predicated region
        $region53: #{tpu_custom_call.1} parent=39 // pred_check
          %p362 = pneg %p147
        $region54: #{tpu_custom_call.1} parent=39 // pred_check_branch
          %364 = sbr.rel (%p362) target = $region56
        $region55: #{tpu_custom_call.1} parent=39 // pred_region
          %366 = dma.done %s358, 128
        $region56: #{tpu_custom_call.1} parent=39 // pred_fallthru
          _
        %s367 = sand.u32 %s28, 1
        %s368 = scalar_lea.sflag [#allocation9], %s367
        %s369 = sand.u32 %s162, 1
        %s370 = smul.addr %s369, 8
        %s371 = scalar_lea.vmem [#allocation10], %s370
        // Predicated region
        $region57: #{tpu_custom_call.1} parent=39 // pred_check
          %p372 = pneg %p175
        $region58: #{tpu_custom_call.1} parent=39 // pred_check_branch
          %374 = sbr.rel (%p372) target = $region60
        $region59: #{tpu_custom_call.1} parent=39 // pred_region
          %376 = dma.done %s368, 128
        $region60: #{tpu_custom_call.1} parent=39 // pred_fallthru
          _
        %s377 = sand.u32 %s50, 1
        %s378 = scalar_lea.sflag [#allocation3], %s377
        %s379 = sand.u32 %s50, 1
        %s380 = smul.addr %s379, 8
        %s381 = scalar_lea.vmem [#allocation2], %s380
        %p382 = pneg %p63
        %p383 = pneg %p60
        %s384 = sand.u32 %s28, 1
        %s385 = scalar_lea.sflag [#allocation6], %s384
        %s386 = sand.u32 %s78, 1
        %s387 = smul.addr %s386, 8
        %s388 = scalar_lea.vmem [#allocation5], %s387
        %p389 = pneg %p91
        %p390 = pneg %p88
        %s391 = sand.u32 %s28, 1
        %s392 = scalar_lea.sflag [#allocation6], %s391
        %s393 = sand.u32 %s106, 1
        %s394 = smul.addr %s393, 8
        %s395 = scalar_lea.vmem [#allocation7], %s394
        %p396 = pneg %p119
        %p397 = pneg %p116
        %s398 = sand.u32 %s28, 1
        %s399 = scalar_lea.sflag [#allocation9], %s398
        %s400 = sand.u32 %s134, 1
        %s401 = smul.addr %s400, 8
        %s402 = scalar_lea.vmem [#allocation8], %s401
        %p403 = pneg %p147
        %p404 = pneg %p144
        %s405 = sand.u32 %s28, 1
        %s406 = scalar_lea.sflag [#allocation9], %s405
        %s407 = sand.u32 %s162, 1
        %s408 = smul.addr %s407, 8
        %s409 = scalar_lea.vmem [#allocation10], %s408
        %p410 = pneg %p175
        %p411 = pneg %p172
        %p412 = pneg %p201
        %p413 = pneg %p198
        %s414 = sand.u32 %s188, 1
        %s415 = scalar_lea.sflag [#allocation4], %s414
        %s416 = sand.u32 %s188, 1
        %s417 = smul.addr %s416, 56
        %s418 = scalar_lea.vmem [#allocation11], %s417
        %s419 = sadd.s32 %s32, %s33
        %s420 = sadd.s32 %s32, %s33
        %s421 = sadd.s32 %s32, %s33
        %s422 = sadd.s32 %s32, %s33
        %s423 = sadd.s32 %s32, %s33
        %p424 = scmp.eq.s32.totalorder %s33, 0
        // Predicated region
        $region61: #{tpu_custom_call.1} parent=39 // pred_check
          %p425 = pneg %p424
        $region62: #{tpu_custom_call.1} parent=39 // pred_check_branch
          %427 = sbr.rel (%p425) target = $region64
        $region63: #{tpu_custom_call.1} parent=39 // pred_region
          %428 = vst [vmem:[%s418] sm:$0xff] 0.0
          %429 = vst [vmem:[%s418 + $0x8] sm:$0xff] 0.0
          %430 = vst [vmem:[%s418 + $0x10] sm:$0xff] 0.0
          %431 = vst [vmem:[%s418 + $0x18] sm:$0xff] 0.0
          %432 = vst [vmem:[%s418 + $0x20] sm:$0xff] 0.0
          %433 = vst [vmem:[%s418 + $0x28] sm:$0xff] 0.0
          %434 = vst [vmem:[%s418 + $0x30] sm:$0xff] 0.0
        $region64: #{tpu_custom_call.1} parent=39 // pred_fallthru
          _
        %v435 = vld [vmem:[%s371] sm:$0xff]
        %vm436 = vcmp.eq.f32.partialorder %v435, 2.0
        %v437 = vld [vmem:[%s331] sm:$0xff]
        %v438 = vld [vmem:[%s351] sm:$0xff]
        %v439 = vld [vmem:[%s418] sm:$0xff]
        %v440 = vmul.f32 %v437, %v438
        %v441 = vadd.f32 %v440, 0.0
        %v442 = vadd.f32 %v439, %v441
        %443 = vst [vmem:[%s418] sm:$0xff] %v442
        %s444 = scalar_lea.vmem %s418, 8 [#allocation11]
        %v445 = vld [vmem:[%s444] sm:$0xff]
        %v446 = vadd.f32 %v437, 0.0
        %v447 = vadd.f32 %v445, %v446
        %448 = vst [vmem:[%s444] sm:$0xff] %v447
        %s449 = scalar_lea.vmem %s418, 16 [#allocation11]
        %v450 = vld [vmem:[%s449] sm:$0xff]
        %v451 = vadd.f32 %v438, 0.0
        %v452 = vadd.f32 %v450, %v451
        %453 = vst [vmem:[%s449] sm:$0xff] %v452
        %v454 = vsel %vm436, %v437, 0.0
        %v455 = vld [vmem:[%s341] sm:$0xff]
        %v456 = vld [vmem:[%s361] sm:$0xff]
        %s457 = scalar_lea.vmem %s418, 24 [#allocation11]
        %v458 = vld [vmem:[%s457] sm:$0xff]
        %v459 = vmul.f32 %v455, %v456
        %v460 = vadd.f32 %v459, 0.0
        %v461 = vadd.f32 %v458, %v460
        %462 = vst [vmem:[%s457] sm:$0xff] %v461
        %s463 = scalar_lea.vmem %s418, 32 [#allocation11]
        %v464 = vld [vmem:[%s463] sm:$0xff]
        %v465 = vadd.f32 %v455, 0.0
        %v466 = vadd.f32 %v464, %v465
        %467 = vst [vmem:[%s463] sm:$0xff] %v466
        %s468 = scalar_lea.vmem %s418, 40 [#allocation11]
        %v469 = vld [vmem:[%s468] sm:$0xff]
        %v470 = vadd.f32 %v456, 0.0
        %v471 = vadd.f32 %v469, %v470
        %472 = vst [vmem:[%s468] sm:$0xff] %v471
        %v473 = vsel %vm436, %v455, 0.0
        %v474 = vsub.f32 %v454, %v473
        %s475 = scalar_lea.vmem %s418, 48 [#allocation11]
        %v476 = vld [vmem:[%s475] sm:$0xff]
        %v477 = vmul.f32 %v474, %v474
        %v478 = vadd.f32 %v477, 0.0
        %v479 = vadd.f32 %v476, %v478
        %480 = vst [vmem:[%s475] sm:$0xff] %v479
        %s481 = sand.u32 %s188, 1
        %s482 = scalar_lea.sflag [#allocation4], %s481
        %s483 = sand.u32 %s188, 1
        %s484 = smul.addr %s483, 56
        %s485 = scalar_lea.vmem [#allocation11], %s484
        // Predicated region
        $region65: #{tpu_custom_call.1} parent=39 // pred_check
          %p486 = pneg %p198
        $region66: #{tpu_custom_call.1} parent=39 // pred_check_branch
          %488 = sbr.rel (%p486) target = $region68
        $region67: #{tpu_custom_call.1} parent=39 // pred_region
          %490 = vsyncadd %s482, 0
          %s491 = smul.addr %s32, 7
          %s492 = smul.addr %s491, 8
          %s493 = scalar_lea.hbm %s5, %s492
          %s494 = sshll.u32 %s485, 4
          %s495 = int_to_ptr.vmem [resolvable:$true] %s494
          %s496 = sshll.u32 %s493, 4
          %s497 = int_to_ptr.hbm [resolvable:$true] %s496
          %502 = dma.vmem_to_hbm [thread:$0]  %s495, 896, %s497, %s482, 128, 128, 8
        $region68: #{tpu_custom_call.1} parent=39 // pred_fallthru
          _
      $region40: #{tpu_custom_call.1} parent=5 // pred_fallthru
        _
      %p503 = scmp.le.s32.totalorder 2, %s23
      // Predicated region
      $region69: #{tpu_custom_call.1} parent=5 // pred_check
        %p504 = pneg %p503
      $region70: #{tpu_custom_call.1} parent=5 // pred_check_branch
        %506 = sbr.rel (%p504) target = $region72
      $region71: #{tpu_custom_call.1} parent=5 // pred_region
        %s507 = ssub.s32 %s23, 2
        // Predicated region
        $region73: #{tpu_custom_call.1} parent=71 // pred_check
          %p508 = pneg %p204
        $region74: #{tpu_custom_call.1} parent=71 // pred_check_branch
          %510 = sbr.rel (%p508) target = $region76
        $region75: #{tpu_custom_call.1} parent=71 // pred_region
          %s511 = sand.u32 %s189, 1
          %s512 = scalar_lea.sflag [#allocation4], %s511
          %s513 = sand.u32 %s189, 1
          %s514 = smul.addr %s513, 56
          %s515 = scalar_lea.vmem [#allocation11], %s514
          %517 = dma.done %s512, 896
        $region76: #{tpu_custom_call.1} parent=71 // pred_fallthru
          _
      $region72: #{tpu_custom_call.1} parent=5 // pred_fallthru
        _
    $region6: #{tpu_custom_call.1} parent=1 // loop_footer
      %s27 = sadd.s32 1, %s23
    $region7: #{tpu_custom_call.1} parent=1 // loop_footer_branch
      %22 = sbr.rel target = $region3
    $region8: #{tpu_custom_call.1} parent=1 // loop_exit
      _
    %518 = vsyncpa [#allocation3], 1
    %s519 = scalar_lea.sflag [#allocation3], 1
    %520 = vsyncpa %s519, 1
    %521 = vsyncpa [#allocation6], 1
    %s522 = scalar_lea.sflag [#allocation6], 1
    %523 = vsyncpa %s522, 1
    %524 = vsyncpa [#allocation9], 1
    %s525 = scalar_lea.sflag [#allocation9], 1
    %526 = vsyncpa %s525, 1
    %527 = vsyncpa [#allocation4], 1
    %s528 = scalar_lea.sflag [#allocation4], 1
    %529 = vsyncpa %s528, 1

</llo_original>
